<compile_context>
chip_gen: v7x
topology: tpu7x:2x2x1
jax: 0.10.0
libtpu: 0.0.40
codegen_flags: <defaults>
</compile_context>

<pallas_src>
import jax
import jax.numpy as jnp
from jax.experimental import pallas as pl
from jax.experimental.pallas import tpu as pltpu

BN_EPS = 1e-5


def _round_up(n, m):
    return ((n + m - 1) // m) * m


# ----------------------------------------------------------------------------
# Fused whole-network Pallas kernel
#   refs layout: x, [w_i, b_i] * n_layers, out_w, out_b, o_ref
#   Weights are pre-transposed to [F_in, F_out] (bf16); biases are [1, F_out] f32.
#   Each "layer" is relu(x @ W + b)  (input Linear and all BN affines already
#   folded in at prep time); the final Linear has no epilogue.
# ----------------------------------------------------------------------------
def _make_fused_kernel(n_layers, mxu_dtype):
    def kernel(x_ref, *rest):
        o_ref = rest[-1]
        out_w_ref, out_b_ref = rest[-3], rest[-2]

        # Cast to the MXU dtype at the dot inputs only; bias add / ReLU stay in
        # f32 (v5e has no bf16 VPU/EUP path).
        y = x_ref[...].astype(mxu_dtype)

        # Middle blocks (input Linear + BN scale/shift already folded in).
        for i in range(n_layers):
            w_ref, b_ref = rest[2 * i], rest[2 * i + 1]
            z = jnp.dot(y, w_ref[...], preferred_element_type=jnp.float32) + b_ref[...]
            y = jnp.maximum(z, 0.0).astype(mxu_dtype)

        # Dropout: identity in eval mode.
        # TODO(synk): training-mode dropout (random mask / (1-p)) not implemented.

        # Output Linear (last BN shift folded into out_b): unpadded narrow store.
        o_ref[...] = (jnp.dot(y, out_w_ref[...], preferred_element_type=jnp.float32)
                      + out_b_ref[...]).astype(o_ref.dtype)

    return kernel


# ----------------------------------------------------------------------------
# Parameter construction (deterministic, mimics nn.Linear / nn.BatchNorm1d shapes)
# ----------------------------------------------------------------------------
def _linear_params(key, in_f, out_f):
    kw, kb = jax.random.split(key)
    bound = 1.0 / jnp.sqrt(jnp.float32(in_f))
    w = jax.random.uniform(kw, (out_f, in_f), jnp.float32, -bound, bound)
    b = jax.random.uniform(kb, (out_f,), jnp.float32, -bound, bound)
    return w, b


def _bn_params(key, num_f):
    kg, kb, km, kv = jax.random.split(key, 4)
    gamma = jax.random.uniform(kg, (num_f,), jnp.float32, 0.5, 1.5)
    beta = 0.1 * jax.random.normal(kb, (num_f,), jnp.float32)
    running_mean = 0.1 * jax.random.normal(km, (num_f,), jnp.float32)
    running_var = jax.random.uniform(kv, (num_f,), jnp.float32, 0.5, 1.5)
    return gamma, beta, running_mean, running_var


def make_linear_net_params(key, in_features, out_features, input_block_out,
                           feature_multipliers):
    feature_list = [input_block_out] + [int(input_block_out * m)
                                        for m in feature_multipliers]
    keys = jax.random.split(key, 2 + 2 * (len(feature_list) - 1))
    ki = iter(range(len(keys)))

    params = {}
    params["in_w"], params["in_b"] = _linear_params(keys[next(ki)],
                                                    in_features, input_block_out)
    blocks = []
    for i in range(len(feature_list) - 1):
        w, b = _linear_params(keys[next(ki)], feature_list[i], feature_list[i + 1])
        gamma, beta, rm, rv = _bn_params(keys[next(ki)], feature_list[i + 1])
        blocks.append(dict(w=w, b=b, gamma=gamma, beta=beta, rm=rm, rv=rv))
    params["blocks"] = blocks
    params["out_w"], params["out_b"] = _linear_params(keys[next(ki)],
                                                      feature_list[-1], out_features)
    return params


# ----------------------------------------------------------------------------
# One-time parameter prep:
#   * pre-transpose weights to [F_in, F_out]
#   * collapse the input Linear into the first middle-block Linear
#   * fold eval-mode BN (scale, shift) of block i into block i+1's weight/bias
#     (last block's BN folds into the output Linear) -- valid for any gamma sign
#   * store weights in bf16 for the MXU, biases stay f32
# ----------------------------------------------------------------------------
def prepare_linear_net_params(params, *, mxu_dtype=jnp.bfloat16):
    f32 = jnp.float32
    # Carry describing what feeds the next Linear's input:
    #   "full": u = x @ carry_w + carry_b       (the input Linear, block 0 only)
    #   "diag": u = carry_w * relu_prev + carry_b   (previous block's BN affine)
    carry_kind = "full"
    carry_w = params["in_w"].T.astype(f32)                 # [in_f, f0]
    carry_b = params["in_b"].reshape(1, -1).astype(f32)

    layers = []
    for blk in params["blocks"]:
        w_t = blk["w"].T.astype(f32)                       # [f_in, f_out]
        b = blk["b"].reshape(1, -1).astype(f32)
        # Compose the carry affine into this Linear (bias first: uses original w_t).
        b = carry_b @ w_t + b
        if carry_kind == "full":
            w_t = carry_w @ w_t                            # collapse input Linear
        else:
            w_t = carry_w.reshape(-1, 1) * w_t             # diag(scale) @ W
        layers.append({"w_t": w_t.astype(mxu_dtype), "b": b})

        scale = blk["gamma"] / jnp.sqrt(blk["rv"] + BN_EPS)
        shift = blk["beta"] - blk["rm"] * scale
        carry_kind, carry_w, carry_b = "diag", scale, shift.reshape(1, -1)

    out_w_t = params["out_w"].T.astype(f32)                # [f_last, out_f]
    out_b = params["out_b"].reshape(1, -1).astype(f32)
    out_b = carry_b @ out_w_t + out_b
    if carry_kind == "full":                               # degenerate: no blocks
        out_w_t = carry_w @ out_w_t
    else:
        out_w_t = carry_w.reshape(-1, 1) * out_w_t

    return {"layers": layers,
            "out_w_t": out_w_t.astype(mxu_dtype),
            "out_b": out_b,
            "mxu_dtype": mxu_dtype,
            "out_features": int(out_b.shape[1])}


# ----------------------------------------------------------------------------
# Forward passes
# ----------------------------------------------------------------------------
def _pick_batch_tile(B):
    # >= 2 "parallel" grid steps when B is large (uses both TensorCores on v7x),
    # capped at 4096 rows (multiple of 8) to amortize the ~0.35us/step overhead
    # while staying well inside every chip's VMEM.
    half = -(-B // 2)
    return max(8, min(4096, _round_up(half, 8)))


def linear_net_forward_pallas(x, prepped, *, tb=None):
    """x: [B, in_features] float32. Returns [B, out_features] float32."""
    B, in_f = x.shape
    out_f = prepped["out_features"]
    layers = prepped["layers"]
    n_layers = len(layers)
    if tb is None:
        tb = _pick_batch_tile(B)

    def _const_spec(arr):
        # Constant block index -> weights stay VMEM-resident across grid steps.
        # (pl.Buffered(1) would drop the dead second buffer; skipped since VMEM
        #  headroom is ample at these sizes.)
        return pl.BlockSpec(arr.shape, lambda i: (0, 0))

    in_specs = [pl.BlockSpec((tb, in_f), lambda i: (i, 0))]
    operands = [x]
    for lyr in layers:
        in_specs += [_const_spec(lyr["w_t"]), _const_spec(lyr["b"])]
        operands += [lyr["w_t"], lyr["b"]]
    in_specs += [_const_spec(prepped["out_w_t"]), _const_spec(prepped["out_b"])]
    operands += [prepped["out_w_t"], prepped["out_b"]]

    # Advisory cost estimate for XLA's scheduler.
    flops = 0
    w_bytes = 0
    for lyr in layers:
        k, n = lyr["w_t"].shape
        flops += 2 * B * k * n
        w_bytes += lyr["w_t"].size * lyr["w_t"].dtype.itemsize + lyr["b"].size * 4
    k, n = prepped["out_w_t"].shape
    flops += 2 * B * k * n
    w_bytes += (prepped["out_w_t"].size * prepped["out_w_t"].dtype.itemsize
                + prepped["out_b"].size * 4)
    bytes_accessed = x.size * x.dtype.itemsize + B * out_f * 4 + w_bytes

    return pl.pallas_call(
        _make_fused_kernel(n_layers, prepped["mxu_dtype"]),
        out_shape=jax.ShapeDtypeStruct((B, out_f), jnp.float32),
        grid=(pl.cdiv(B, tb),),
        in_specs=in_specs,
        # Unpadded output: block last dim == full dim (no 128-pad writeback,
        # no wrapper slice).
        out_specs=pl.BlockSpec((tb, out_f), lambda i: (i, 0)),
        compiler_params=pltpu.CompilerParams(
            dimension_semantics=("parallel",),       # shards batch tiles on v7x
            vmem_limit_bytes=32 * 1024 * 1024),      # headroom for tb=4096 on v5e
        cost_estimate=pl.CostEstimate(flops=flops, transcendentals=0,
                                      bytes_accessed=bytes_accessed),
    )(*operands)


def linear_net_forward_reference(x, params):
    y = x @ params["in_w"].T + params["in_b"]
    for blk in params["blocks"]:
        y = y @ blk["w"].T + blk["b"]
        y = jnp.maximum(y, 0.0)
        y = (y - blk["rm"]) / jnp.sqrt(blk["rv"] + BN_EPS) * blk["gamma"] + blk["beta"]
    y = y @ params["out_w"].T + params["out_b"]
    return y


# ----------------------------------------------------------------------------
if __name__ == "__main__":
    key = jax.random.PRNGKey(0)
    k_params, k_x = jax.random.split(key)

    # LinearNet(in_features=32, out_features=8, input_block_out=32,
    #           feature_multipliers=[1.0, 2.0], dropout=0.5)
    in_features = 32
    out_features = 8
    input_block_out = 32
    feature_multipliers = [1.0, 2.0]
    batch = 8

    params = make_linear_net_params(k_params, in_features, out_features,
                                    input_block_out, feature_multipliers)
    prepped = prepare_linear_net_params(params)
    x = jax.random.normal(k_x, (batch, in_features), jnp.float32)

    out = jax.block_until_ready(linear_net_forward_pallas(x, prepped))

    ref = linear_net_forward_reference(x, params)
    assert out.shape == (batch, out_features), out.shape
    # bf16 MXU operands (f32 accumulate) -> looser tolerance than pure f32.
    assert jnp.allclose(out, ref, atol=2e-2, rtol=2e-2), \
        float(jnp.max(jnp.abs(out - ref)))

    print("KERNEL_OK")
</pallas_src>

<mosaic_0001>
module attributes {stable_mosaic.version = 11 : i64} {
  func.func @kernel(%arg0: i32, %arg1: memref<8x32xf32, #tpu.memory_space<vmem>>, %arg2: memref<32x32xbf16, #tpu.memory_space<vmem>>, %arg3: memref<1x32xf32, #tpu.memory_space<vmem>>, %arg4: memref<32x64xbf16, #tpu.memory_space<vmem>>, %arg5: memref<1x64xf32, #tpu.memory_space<vmem>>, %arg6: memref<64x8xbf16, #tpu.memory_space<vmem>>, %arg7: memref<1x8xf32, #tpu.memory_space<vmem>>, %arg8: memref<8x8xf32, #tpu.memory_space<vmem>>) attributes {dimension_semantics = [#tpu.dimension_semantics<parallel>], iteration_bounds = array<i64: 1>, scalar_prefetch = 0 : i64, scratch_operands = 0 : i64, tpu.core_type = #tpu.core_type<tc>, window_params = [{transform_indices = @transform_0, window_bounds = array<i64: 8, 32>}, {pipeline_mode = #tpu.pipeline_mode<synchronous>, transform_indices = @transform_1, window_bounds = array<i64: 32, 32>}, {pipeline_mode = #tpu.pipeline_mode<synchronous>, transform_indices = @transform_2, window_bounds = array<i64: 1, 32>}, {pipeline_mode = #tpu.pipeline_mode<synchronous>, transform_indices = @transform_3, window_bounds = array<i64: 32, 64>}, {pipeline_mode = #tpu.pipeline_mode<synchronous>, transform_indices = @transform_4, window_bounds = array<i64: 1, 64>}, {pipeline_mode = #tpu.pipeline_mode<synchronous>, transform_indices = @transform_5, window_bounds = array<i64: 64, 8>}, {pipeline_mode = #tpu.pipeline_mode<synchronous>, transform_indices = @transform_6, window_bounds = array<i64: 1, 8>}, {transform_indices = @transform_7, window_bounds = array<i64: 8, 8>}]} {
    %c0 = arith.constant 0 : index
    %c0_0 = arith.constant 0 : index
    %0 = vector.load %arg1[%c0, %c0_0] : memref<8x32xf32, #tpu.memory_space<vmem>>, vector<8x32xf32>
    %1 = arith.truncf %0 : vector<8x32xf32> to vector<8x32xbf16>
    %c0_1 = arith.constant 0 : index
    %c0_2 = arith.constant 0 : index
    %2 = vector.load %arg2[%c0_1, %c0_2] : memref<32x32xbf16, #tpu.memory_space<vmem>>, vector<32x32xbf16>
    %cst = arith.constant dense<0.000000e+00> : vector<8x32xf32>
    %3 = tpu.matmul %1, %2, %cst {dimension_numbers = #tpu.dot_dimension_numbers<[1], [0], [0], [1], [0, 0, 1, 1], [], []>} : vector<8x32xbf16>, vector<32x32xbf16>, vector<8x32xf32> -> vector<8x32xf32>
    %c0_3 = arith.constant 0 : index
    %c0_4 = arith.constant 0 : index
    %4 = vector.load %arg3[%c0_3, %c0_4] : memref<1x32xf32, #tpu.memory_space<vmem>>, vector<1x32xf32>
    %5 = vector.broadcast %4 : vector<1x32xf32> to vector<8x32xf32>
    %6 = arith.addf %3, %5 : vector<8x32xf32>
    %cst_5 = arith.constant 0.000000e+00 : f32
    %7 = vector.broadcast %cst_5 : f32 to vector<8x32xf32>
    %8 = arith.maximumf %6, %7 : vector<8x32xf32>
    %9 = arith.truncf %8 : vector<8x32xf32> to vector<8x32xbf16>
    %c0_6 = arith.constant 0 : index
    %c0_7 = arith.constant 0 : index
    %10 = vector.load %arg4[%c0_6, %c0_7] : memref<32x64xbf16, #tpu.memory_space<vmem>>, vector<32x64xbf16>
    %cst_8 = arith.constant dense<0.000000e+00> : vector<8x64xf32>
    %11 = tpu.matmul %9, %10, %cst_8 {dimension_numbers = #tpu.dot_dimension_numbers<[1], [0], [0], [1], [0, 0, 1, 1], [], []>} : vector<8x32xbf16>, vector<32x64xbf16>, vector<8x64xf32> -> vector<8x64xf32>
    %c0_9 = arith.constant 0 : index
    %c0_10 = arith.constant 0 : index
    %12 = vector.load %arg5[%c0_9, %c0_10] : memref<1x64xf32, #tpu.memory_space<vmem>>, vector<1x64xf32>
    %13 = vector.broadcast %12 : vector<1x64xf32> to vector<8x64xf32>
    %14 = arith.addf %11, %13 : vector<8x64xf32>
    %cst_11 = arith.constant 0.000000e+00 : f32
    %15 = vector.broadcast %cst_11 : f32 to vector<8x64xf32>
    %16 = arith.maximumf %14, %15 : vector<8x64xf32>
    %17 = arith.truncf %16 : vector<8x64xf32> to vector<8x64xbf16>
    %c0_12 = arith.constant 0 : index
    %c0_13 = arith.constant 0 : index
    %18 = vector.load %arg6[%c0_12, %c0_13] : memref<64x8xbf16, #tpu.memory_space<vmem>>, vector<64x8xbf16>
    %cst_14 = arith.constant dense<0.000000e+00> : vector<8x8xf32>
    %19 = tpu.matmul %17, %18, %cst_14 {dimension_numbers = #tpu.dot_dimension_numbers<[1], [0], [0], [1], [0, 0, 1, 1], [], []>} : vector<8x64xbf16>, vector<64x8xbf16>, vector<8x8xf32> -> vector<8x8xf32>
    %c0_15 = arith.constant 0 : index
    %c0_16 = arith.constant 0 : index
    %20 = vector.load %arg7[%c0_15, %c0_16] : memref<1x8xf32, #tpu.memory_space<vmem>>, vector<1x8xf32>
    %21 = vector.broadcast %20 : vector<1x8xf32> to vector<8x8xf32>
    %22 = arith.addf %19, %21 : vector<8x8xf32>
    %c0_17 = arith.constant 0 : index
    %c0_18 = arith.constant 0 : index
    %23 = vector.load %arg8[%c0_17, %c0_18] : memref<8x8xf32, #tpu.memory_space<vmem>>, vector<8x8xf32>
    tpu.vector_store %arg8[%c0_17, %c0_18], %22 {strides = array<i32>} : memref<8x8xf32, #tpu.memory_space<vmem>>, vector<8x8xf32>,
    return
  }
  func.func @transform_0(%arg0: i32) -> (i32, i32) {
    %c0_i32 = arith.constant 0 : i32
    %c0_i32_0 = arith.constant 0 : i32
    return %arg0, %c0_i32 : i32, i32
  }
  func.func @transform_1(%arg0: i32) -> (i32, i32) {
    %c0_i32 = arith.constant 0 : i32
    %c0_i32_0 = arith.constant 0 : i32
    %c0_i32_1 = arith.constant 0 : i32
    return %c0_i32, %c0_i32_0 : i32, i32
  }
  func.func @transform_2(%arg0: i32) -> (i32, i32) {
    %c0_i32 = arith.constant 0 : i32
    %c0_i32_0 = arith.constant 0 : i32
    %c0_i32_1 = arith.constant 0 : i32
    return %c0_i32, %c0_i32_0 : i32, i32
  }
  func.func @transform_3(%arg0: i32) -> (i32, i32) {
    %c0_i32 = arith.constant 0 : i32
    %c0_i32_0 = arith.constant 0 : i32
    %c0_i32_1 = arith.constant 0 : i32
    return %c0_i32, %c0_i32_0 : i32, i32
  }
  func.func @transform_4(%arg0: i32) -> (i32, i32) {
    %c0_i32 = arith.constant 0 : i32
    %c0_i32_0 = arith.constant 0 : i32
    %c0_i32_1 = arith.constant 0 : i32
    return %c0_i32, %c0_i32_0 : i32, i32
  }
  func.func @transform_5(%arg0: i32) -> (i32, i32) {
    %c0_i32 = arith.constant 0 : i32
    %c0_i32_0 = arith.constant 0 : i32
    %c0_i32_1 = arith.constant 0 : i32
    return %c0_i32, %c0_i32_0 : i32, i32
  }
  func.func @transform_6(%arg0: i32) -> (i32, i32) {
    %c0_i32 = arith.constant 0 : i32
    %c0_i32_0 = arith.constant 0 : i32
    %c0_i32_1 = arith.constant 0 : i32
    return %c0_i32, %c0_i32_0 : i32, i32
  }
  func.func @transform_7(%arg0: i32) -> (i32, i32) {
    %c0_i32 = arith.constant 0 : i32
    %c0_i32_0 = arith.constant 0 : i32
    return %arg0, %c0_i32 : i32, i32
  }
}

</mosaic_0001>

<llo_original>
// kernel: tpu_custom_call.1
$region0: #{tpu_custom_call.1}
  #allocation0 [shape = 'u32[]', space=smem, size = 0x4, offset = 0x4, fixed_abs, tag = 'smem constant byte address 0x4 - core index']
  #allocation1 [shape = 'u32[144,128]{1,0:T(1,128)}', space=vmem, size = 0x12000, scoped, tag = 'internal scratch']
  %s0 = inlined_call_operand.hbm [shape: f32[8,32], index: 0, kind: input, shape index: {}]
  %s1 = inlined_call_operand.vmem [shape: bf16[32,32], index: 1, kind: input, shape index: {}]
  %s2 = inlined_call_operand.vmem [shape: f32[1,32], index: 2, kind: input, shape index: {}]
  %s3 = inlined_call_operand.vmem [shape: bf16[32,64], index: 3, kind: input, shape index: {}]
  %s4 = inlined_call_operand.vmem [shape: f32[1,64], index: 4, kind: input, shape index: {}]
  %s5 = inlined_call_operand.vmem [shape: bf16[64,8], index: 5, kind: input, shape index: {}]
  %s6 = inlined_call_operand.vmem [shape: f32[1,8], index: 6, kind: input, shape index: {}]
  %s7 = inlined_call_operand.hbm [shape: f32[8,8], index: 7, kind: output, shape index: {}]
  %s8 = sld [smem:[#allocation0]]
  $region42: #{tpu_custom_call.1} parent=0
    _
  %s10 = ssub.s32 1, %s8
  %s11 = scalar_select 0, %s10, %s8
  $region1: #{tpu_custom_call.1} parent=0
    #allocation2 [shape = 'u8[4096]{0}', space=vmem, size = 0x1000, scoped, tag = 'input window, operand 0, single buffered']
    #allocation3 [shape = 's32[1]{0}', space=sflag, size = 0x4, scoped, tag = 'scoped memory for tpu_custom_call.1']
    #allocation4 [shape = 's32[1]{0}', space=sflag, size = 0x4, scoped, tag = 'scoped memory for tpu_custom_call.1']
    #allocation5 [shape = 'u8[4096]{0}', space=vmem, size = 0x1000, scoped, tag = 'output window, operand 0, single buffered']
    %12 = vsyncpa [#allocation3], 0
    %13 = vsyncpa [#allocation4], 0
    // Predicated region
    $region2: #{tpu_custom_call.1} parent=1 // pred_check
      _
    $region3: #{tpu_custom_call.1} parent=1 // pred_check_branch
      %15 = sbr.rel (0) target = $region5
    $region4: #{tpu_custom_call.1} parent=1 // pred_region
      %s17 = ssub.s32 128, 128
      %18 = vsyncadd [#allocation3], %s17
      %s20 = sshll.u32 [#allocation2], 4
      %s21 = int_to_ptr.vmem [resolvable:$true] %s20
      %23 = dma.hbm_to_vmem [thread:$0]  %s0, 128, %s21, [#allocation3]
    $region5: #{tpu_custom_call.1} parent=1 // pred_fallthru
      _
    // Predicated region
    $region6: #{tpu_custom_call.1} parent=1 // pred_check
      _
    $region7: #{tpu_custom_call.1} parent=1 // pred_check_branch
      %25 = sbr.rel (0) target = $region9
    $region8: #{tpu_custom_call.1} parent=1 // pred_region
      _
    $region9: #{tpu_custom_call.1} parent=1 // pred_fallthru
      _
    // Predicated region
    $region10: #{tpu_custom_call.1} parent=1 // pred_check
      _
    $region11: #{tpu_custom_call.1} parent=1 // pred_check_branch
      %27 = sbr.rel (0) target = $region13
    $region12: #{tpu_custom_call.1} parent=1 // pred_region
      _
    $region13: #{tpu_custom_call.1} parent=1 // pred_fallthru
      _
    // Predicated region
    $region14: #{tpu_custom_call.1} parent=1 // pred_check
      _
    $region15: #{tpu_custom_call.1} parent=1 // pred_check_branch
      %29 = sbr.rel (0) target = $region17
    $region16: #{tpu_custom_call.1} parent=1 // pred_region
      _
    $region17: #{tpu_custom_call.1} parent=1 // pred_fallthru
      _
    // Predicated region
    $region18: #{tpu_custom_call.1} parent=1 // pred_check
      _
    $region19: #{tpu_custom_call.1} parent=1 // pred_check_branch
      %31 = sbr.rel (0) target = $region21
    $region20: #{tpu_custom_call.1} parent=1 // pred_region
      _
    $region21: #{tpu_custom_call.1} parent=1 // pred_fallthru
      _
    // Predicated region
    $region22: #{tpu_custom_call.1} parent=1 // pred_check
      _
    $region23: #{tpu_custom_call.1} parent=1 // pred_check_branch
      %33 = sbr.rel (0) target = $region25
    $region24: #{tpu_custom_call.1} parent=1 // pred_region
      _
    $region25: #{tpu_custom_call.1} parent=1 // pred_fallthru
      _
    // Predicated region
    $region26: #{tpu_custom_call.1} parent=1 // pred_check
      _
    $region27: #{tpu_custom_call.1} parent=1 // pred_check_branch
      %35 = sbr.rel (0) target = $region29
    $region28: #{tpu_custom_call.1} parent=1 // pred_region
      _
    $region29: #{tpu_custom_call.1} parent=1 // pred_fallthru
      _
    // Predicated region
    $region30: #{tpu_custom_call.1} parent=1 // pred_check
      _
    $region31: #{tpu_custom_call.1} parent=1 // pred_check_branch
      %37 = sbr.rel (0) target = $region33
    $region32: #{tpu_custom_call.1} parent=1 // pred_region
      %38 = dma.done [#allocation3], 128
    $region33: #{tpu_custom_call.1} parent=1 // pred_fallthru
      _
    %v40 = vld [vmem:[#allocation2] sm:$0xff]
    %v41 = vpack.c.bf16 %v40, %v40
    %v42 = vld [vmem:[%s1] sm:$0xf]
    %v43 = vld [vmem:[%s1 + $0x4] sm:$0xf]
    %v44 = vld [vmem:[%s1 + $0x8] sm:$0xf]
    %v45 = vld [vmem:[%s1 + $0xc] sm:$0xf]
    %v46 = vld [vmem:[%s2] sm:$0x1]
    %v48 = vlaneseq
    %v49 = vshrl.u32 %v48, 7
    %v50 = vsub.s32 0, %v49
    %v51 = vrot.slane %v46, %v50
    %v57 = vunpack.c.l.b16 %v42
    %v58 = vunpack.c.l.b16 %v43
    %v59 = vunpack.c.l.b16 %v44
    %v60 = vunpack.c.l.b16 %v45
    %v61 = vpack.c.b16 %v58, %v57
    %v62 = vpack.c.b16 %v60, %v59
    %vm65 = vcmask 261120
    %v67 = vsel %vm65, %v41, 0
    %69 = vmatprep.subr.bf16.mxu0 0
    %70 = vmatpush1.bf16.msra.mxu0 %v61
    %71 = vmatprep.subr.bf16.mxu0 0
    %72 = vmatpush1.bf16.msra.mxu0 %v62
    %73 = vmatprep.subr.bf16.mxu0 0
    %74 = vmatpush1.bf16.msra.mxu0 0
    %75 = vmatprep.subr.bf16.mxu0 0
    %76 = vmatpush1.bf16.msra.mxu0 0
    %77 = vmatprep.subr.bf16.mxu0 0
    %78 = vmatpush1.bf16.msra.mxu0 0
    %79 = vmatprep.subr.bf16.mxu0 0
    %80 = vmatpush1.bf16.msra.mxu0 0
    %81 = vmatprep.subr.bf16.mxu0 0
    %82 = vmatpush1.bf16.msra.mxu0 0
    %83 = vmatprep.subr.bf16.mxu0 0
    %84 = vmatpush1.bf16.msra.mxu0 0
    %85 = vmatprep.subr.bf16.mxu0 0
    %86 = vmatpush1.bf16.msra.mxu0 0
    %87 = vmatprep.subr.bf16.mxu0 0
    %88 = vmatpush1.bf16.msra.mxu0 0
    %89 = vmatprep.subr.bf16.mxu0 0
    %90 = vmatpush1.bf16.msra.mxu0 0
    %91 = vmatprep.subr.bf16.mxu0 0
    %92 = vmatpush1.bf16.msra.mxu0 0
    %93 = vmatprep.subr.bf16.mxu0 0
    %94 = vmatpush1.bf16.msra.mxu0 0
    %95 = vmatprep.subr.bf16.mxu0 0
    %96 = vmatpush1.bf16.msra.mxu0 0
    %97 = vmatprep.subr.bf16.mxu0 0
    %98 = vmatpush1.bf16.msra.mxu0 0
    %99 = vmatprep.subr.bf16.mxu0 0
    %100 = vmatpush1.bf16.msra.mxu0 0
    %101 = vmatprep.mubr.bf16.mxu0 0
    %102 = vmatmul.mubr.bf16.gmra.mrb[0].mxu0 %v67
    %v103 = vpop.f32.mrb[0].mxu0
    %v104 = vadd.f32 %v51, %v103
    %v105 = vpop.f32.mrb[0].mxu0
    %v106 = vpop.f32.mrb[0].mxu0
    %v107 = vpop.f32.mrb[0].mxu0
    %108 = vdwg.mxu0
    %v109 = vmax.f32 %v104, 0.0
    %v110 = vpack.c.bf16 %v109, %v109
    %v111 = vld [vmem:[%s3] sm:$0xf]
    %v112 = vld [vmem:[%s3 + $0x4] sm:$0xf]
    %v113 = vld [vmem:[%s3 + $0x8] sm:$0xf]
    %v114 = vld [vmem:[%s3 + $0xc] sm:$0xf]
    %v115 = vld [vmem:[%s4] sm:$0x1]
    %v117 = vlaneseq
    %v118 = vshrl.u32 %v117, 7
    %v119 = vsub.s32 0, %v118
    %v120 = vrot.slane %v115, %v119
    %v126 = vunpack.c.l.b16 %v111
    %v127 = vunpack.c.l.b16 %v112
    %v128 = vunpack.c.l.b16 %v113
    %v129 = vunpack.c.l.b16 %v114
    %v130 = vpack.c.b16 %v127, %v126
    %v131 = vpack.c.b16 %v129, %v128
    %v135 = vsel %vm65, %v110, 0
    %137 = vmatprep.subr.bf16.mxu0 0
    %138 = vmatpush1.bf16.msra.mxu0 %v130
    %139 = vmatprep.subr.bf16.mxu0 0
    %140 = vmatpush1.bf16.msra.mxu0 %v131
    %141 = vmatprep.subr.bf16.mxu0 0
    %142 = vmatpush1.bf16.msra.mxu0 0
    %143 = vmatprep.subr.bf16.mxu0 0
    %144 = vmatpush1.bf16.msra.mxu0 0
    %145 = vmatprep.subr.bf16.mxu0 0
    %146 = vmatpush1.bf16.msra.mxu0 0
    %147 = vmatprep.subr.bf16.mxu0 0
    %148 = vmatpush1.bf16.msra.mxu0 0
    %149 = vmatprep.subr.bf16.mxu0 0
    %150 = vmatpush1.bf16.msra.mxu0 0
    %151 = vmatprep.subr.bf16.mxu0 0
    %152 = vmatpush1.bf16.msra.mxu0 0
    %153 = vmatprep.subr.bf16.mxu0 0
    %154 = vmatpush1.bf16.msra.mxu0 0
    %155 = vmatprep.subr.bf16.mxu0 0
    %156 = vmatpush1.bf16.msra.mxu0 0
    %157 = vmatprep.subr.bf16.mxu0 0
    %158 = vmatpush1.bf16.msra.mxu0 0
    %159 = vmatprep.subr.bf16.mxu0 0
    %160 = vmatpush1.bf16.msra.mxu0 0
    %161 = vmatprep.subr.bf16.mxu0 0
    %162 = vmatpush1.bf16.msra.mxu0 0
    %163 = vmatprep.subr.bf16.mxu0 0
    %164 = vmatpush1.bf16.msra.mxu0 0
    %165 = vmatprep.subr.bf16.mxu0 0
    %166 = vmatpush1.bf16.msra.mxu0 0
    %167 = vmatprep.subr.bf16.mxu0 0
    %168 = vmatpush1.bf16.msra.mxu0 0
    %169 = vmatprep.mubr.bf16.mxu0 0
    %170 = vmatmul.mubr.bf16.gmra.mrb[0].mxu0 %v135
    %v171 = vpop.f32.mrb[0].mxu0
    %v172 = vadd.f32 %v120, %v171
    %v173 = vpop.f32.mrb[0].mxu0
    %v174 = vpop.f32.mrb[0].mxu0
    %v175 = vpop.f32.mrb[0].mxu0
    %176 = vdwg.mxu0
    %v177 = vmax.f32 %v172, 0.0
    %v178 = vpack.c.bf16 %v177, %v177
    %v179 = vld [vmem:[%s5] sm:$0xf]
    %v180 = vld [vmem:[%s5 + $0x4] sm:$0xf]
    %v181 = vld [vmem:[%s5 + $0x8] sm:$0xf]
    %v182 = vld [vmem:[%s5 + $0xc] sm:$0xf]
    %v183 = vld [vmem:[%s5 + $0x10] sm:$0xf]
    %v184 = vld [vmem:[%s5 + $0x14] sm:$0xf]
    %v185 = vld [vmem:[%s5 + $0x18] sm:$0xf]
    %v186 = vld [vmem:[%s5 + $0x1c] sm:$0xf]
    %v187 = vld [vmem:[%s6] sm:$0x1]
    %v189 = vlaneseq
    %v190 = vshrl.u32 %v189, 7
    %v191 = vsub.s32 0, %v190
    %v192 = vrot.slane %v187, %v191
    %v202 = vunpack.c.l.b16 %v179
    %v203 = vunpack.c.l.b16 %v180
    %v204 = vunpack.c.l.b16 %v181
    %v205 = vunpack.c.l.b16 %v182
    %v206 = vunpack.c.l.b16 %v183
    %v207 = vunpack.c.l.b16 %v184
    %v208 = vunpack.c.l.b16 %v185
    %v209 = vunpack.c.l.b16 %v186
    %v210 = vpack.c.b16 %v203, %v202
    %v211 = vpack.c.b16 %v205, %v204
    %v212 = vpack.c.b16 %v207, %v206
    %v213 = vpack.c.b16 %v209, %v208
    %vm218 = vcmask 523264
    %v220 = vsel %vm218, %v178, 0
    %222 = vmatprep.subr.bf16.mxu0 0
    %223 = vmatpush1.bf16.msra.mxu0 %v210
    %224 = vmatprep.subr.bf16.mxu0 0
    %225 = vmatpush1.bf16.msra.mxu0 %v211
    %226 = vmatprep.subr.bf16.mxu0 0
    %227 = vmatpush1.bf16.msra.mxu0 %v212
    %228 = vmatprep.subr.bf16.mxu0 0
    %229 = vmatpush1.bf16.msra.mxu0 %v213
    %230 = vmatprep.subr.bf16.mxu0 0
    %231 = vmatpush1.bf16.msra.mxu0 0
    %232 = vmatprep.subr.bf16.mxu0 0
    %233 = vmatpush1.bf16.msra.mxu0 0
    %234 = vmatprep.subr.bf16.mxu0 0
    %235 = vmatpush1.bf16.msra.mxu0 0
    %236 = vmatprep.subr.bf16.mxu0 0
    %237 = vmatpush1.bf16.msra.mxu0 0
    %238 = vmatprep.subr.bf16.mxu0 0
    %239 = vmatpush1.bf16.msra.mxu0 0
    %240 = vmatprep.subr.bf16.mxu0 0
    %241 = vmatpush1.bf16.msra.mxu0 0
    %242 = vmatprep.subr.bf16.mxu0 0
    %243 = vmatpush1.bf16.msra.mxu0 0
    %244 = vmatprep.subr.bf16.mxu0 0
    %245 = vmatpush1.bf16.msra.mxu0 0
    %246 = vmatprep.subr.bf16.mxu0 0
    %247 = vmatpush1.bf16.msra.mxu0 0
    %248 = vmatprep.subr.bf16.mxu0 0
    %249 = vmatpush1.bf16.msra.mxu0 0
    %250 = vmatprep.subr.bf16.mxu0 0
    %251 = vmatpush1.bf16.msra.mxu0 0
    %252 = vmatprep.subr.bf16.mxu0 0
    %253 = vmatpush1.bf16.msra.mxu0 0
    %254 = vmatprep.mubr.bf16.mxu0 0
    %255 = vmatmul.mubr.bf16.gmra.mrb[0].mxu0 %v220
    %v256 = vpop.f32.mrb[0].mxu0
    %v257 = vadd.f32 %v192, %v256
    %v258 = vpop.f32.mrb[0].mxu0
    %v259 = vpop.f32.mrb[0].mxu0
    %v260 = vpop.f32.mrb[0].mxu0
    %261 = vdwg.mxu0
    %vm262 = vcmask 64512
    %263 = vst.msk [vmem:[#allocation5] sm:$0xff] %vm262, %v257
    // Predicated region
    $region34: #{tpu_custom_call.1} parent=1 // pred_check
      _
    $region35: #{tpu_custom_call.1} parent=1 // pred_check_branch
      %265 = sbr.rel (0) target = $region37
    $region36: #{tpu_custom_call.1} parent=1 // pred_region
      %s267 = ssub.s32 128, 128
      %268 = vsyncadd [#allocation4], %s267
      %s270 = sshll.u32 [#allocation5], 4
      %s271 = int_to_ptr.vmem [resolvable:$true] %s270
      %273 = dma.vmem_to_hbm [thread:$0]  %s271, 128, %s7, [#allocation4]
    $region37: #{tpu_custom_call.1} parent=1 // pred_fallthru
      _
    // Predicated region
    $region38: #{tpu_custom_call.1} parent=1 // pred_check
      _
    $region39: #{tpu_custom_call.1} parent=1 // pred_check_branch
      %275 = sbr.rel (0) target = $region41
    $region40: #{tpu_custom_call.1} parent=1 // pred_region
      %276 = dma.done [#allocation4], 128
    $region41: #{tpu_custom_call.1} parent=1 // pred_fallthru
      _
    %277 = vsyncpa [#allocation3], 1
    %278 = vsyncpa [#allocation4], 1

</llo_original>
